<compile_context>
chip_gen: v5e
topology: v5e:2x2
jax: 0.10.0
libtpu: 0.0.40
codegen_flags: <defaults>
</compile_context>

<pallas_src>
import jax
import jax.numpy as jnp
from jax.experimental import pallas as pl
from jax.experimental.pallas import tpu as pltpu

LANE = 128
SUBLANE = 8


def _round_up(x: int, m: int) -> int:
    return (x + m - 1) // m * m


def mlp_kernel(x_ref, w1_ref, b1_ref, w2_ref, b2_ref, o_ref):
    # hidden = tanh(x @ W1 + b1): cast x to bf16 for the MXU, accumulate in f32.
    x = x_ref[...].astype(jnp.bfloat16)
    h = jnp.dot(x, w1_ref[...], preferred_element_type=jnp.float32)
    h = jnp.tanh(h + b1_ref[...])
    # out = h @ W2 + b2: bf16 MXU matmul, f32 accumulate / bias, unpadded store.
    o = jnp.dot(h.astype(jnp.bfloat16), w2_ref[...],
                preferred_element_type=jnp.float32)
    o_ref[...] = (o + b2_ref[...]).astype(o_ref.dtype)


def init_candidate_params(key, in_size, hidden_size, out_size):
    """Deterministic init mirroring Candidate.__init__ (torch Linear layout):
    orthogonal_ weights, bias filled with 0.01."""
    k1, k2 = jax.random.split(key)
    ortho = jax.nn.initializers.orthogonal()
    w1 = ortho(k1, (hidden_size, in_size), jnp.float32)   # (hid, in)
    w2 = ortho(k2, (out_size, hidden_size), jnp.float32)  # (out, hid)
    b1 = jnp.full((hidden_size,), 0.01, jnp.float32)
    b2 = jnp.full((out_size,), 0.01, jnp.float32)
    return w1, b1, w2, b2


def prepare_candidate_params(w1, b1, w2, b2):
    """One-time param prep, hoisted out of the per-call path.
    Only the hidden dim is padded to 128 lanes; K (in_size) and out_size stay raw."""
    hidden_size, in_size = w1.shape
    out_size = w2.shape[0]
    hid_p = _round_up(hidden_size, LANE)

    # W1^T: (in_size, hid_p) bf16, padded hidden columns are zero.
    w1t = (jnp.zeros((in_size, hid_p), jnp.bfloat16)
           .at[:, :hidden_size].set(jnp.transpose(w1).astype(jnp.bfloat16)))
    # W2^T: (hid_p, out_size) bf16, padded hidden rows are zero.
    w2t = (jnp.zeros((hid_p, out_size), jnp.bfloat16)
           .at[:hidden_size, :].set(jnp.transpose(w2).astype(jnp.bfloat16)))
    b1r = jnp.zeros((1, hid_p), jnp.float32).at[0, :hidden_size].set(b1)
    b2r = b2.reshape(1, out_size).astype(jnp.float32)
    return {"w1t": w1t, "b1r": b1r, "w2t": w2t, "b2r": b2r,
            "in_size": in_size, "hidden_size": hidden_size, "out_size": out_size}


def candidate_forward(x, params, *, tm=1024):
    """Forward pass of Candidate: tanh(x @ W1^T + b1) @ W2^T + b2."""
    B, in_size = x.shape
    assert in_size == params["in_size"]
    out_size = params["out_size"]
    w1t, b1r, w2t, b2r = params["w1t"], params["b1r"], params["w2t"], params["b2r"]
    hid_p = w1t.shape[1]

    # Batch tile: multiple of 8; capped so the grid has >=2 steps whenever B > 8
    # (keeps both v7x TensorCores busy); large tile amortizes per-step overhead.
    tm = _round_up(max(tm, SUBLANE), SUBLANE)
    tm = min(tm, _round_up(pl.cdiv(B, 2), SUBLANE))
    tm = max(tm, SUBLANE)
    grid = (pl.cdiv(B, tm),)  # ragged last tile handled by Pallas (no zero-padding)

    resident = lambda i: (0, 0)  # weights & biases stay VMEM-resident across the grid

    cost = pl.CostEstimate(
        flops=2 * B * (in_size * hid_p + hid_p * out_size),
        transcendentals=B * hid_p,
        bytes_accessed=(x.size * x.dtype.itemsize
                        + w1t.size * 2 + w2t.size * 2
                        + b1r.size * 4 + b2r.size * 4
                        + B * out_size * 4),
    )

    return pl.pallas_call(
        mlp_kernel,
        out_shape=jax.ShapeDtypeStruct((B, out_size), jnp.float32),
        grid_spec=pltpu.PrefetchScalarGridSpec(
            num_scalar_prefetch=0,
            grid=grid,
            in_specs=[
                pl.BlockSpec((tm, in_size), lambda i: (i, 0)),  # x tile (pipelined)
                pl.BlockSpec((in_size, hid_p), resident),       # W1 (resident)
                pl.BlockSpec((1, hid_p), resident),             # b1 (resident)
                pl.BlockSpec((hid_p, out_size), resident),      # W2 (resident)
                pl.BlockSpec((1, out_size), resident),          # b2 (resident)
            ],
            out_specs=pl.BlockSpec((tm, out_size), lambda i: (i, 0)),
        ),
        compiler_params=pltpu.CompilerParams(
            dimension_semantics=("parallel",),  # shard batch tiles across TCs (v7x)
        ),
        cost_estimate=cost,
    )(x, w1t, b1r, w2t, b2r)


# TODO(synk): from_crossover / mutate / record_state are host-side evolution
# bookkeeping (RNG masks over params, dict logging) — not forward-pass compute,
# so they are left out of the kernel.


if __name__ == "__main__":
    in_size, hidden_size, out_size = 12, 16, 8
    batch = 4

    key = jax.random.PRNGKey(0)
    kx, kp = jax.random.split(key)
    x = jax.random.normal(kx, (batch, in_size), jnp.float32)
    w1, b1, w2, b2 = init_candidate_params(kp, in_size, hidden_size, out_size)

    # One-time param prep (transposes / padding / bf16 cast hoisted out of the call).
    params = prepare_candidate_params(w1, b1, w2, b2)
    fwd = jax.jit(lambda xx: candidate_forward(xx, params))

    out = jax.block_until_ready(fwd(x))
    assert out.shape == (batch, out_size)

    # Reference 1: emulate the kernel's bf16-MXU / f32-accumulate numerics.
    xb = x.astype(jnp.bfloat16)
    w1b = w1.astype(jnp.bfloat16)
    w2b = w2.astype(jnp.bfloat16)
    h_ref = jnp.tanh(jnp.dot(xb, w1b.T, preferred_element_type=jnp.float32) + b1)
    ref_bf16 = jnp.dot(h_ref.astype(jnp.bfloat16), w2b.T,
                       preferred_element_type=jnp.float32) + b2
    assert jnp.allclose(out, ref_bf16, atol=5e-3, rtol=5e-3), \
        float(jnp.max(jnp.abs(out - ref_bf16)))

    # Reference 2: full-f32 torch-equivalent forward (coarse sanity check).
    ref_f32 = jnp.tanh(x @ w1.T + b1) @ w2.T + b2
    assert jnp.allclose(out, ref_f32, atol=1e-1, rtol=1e-1), \
        float(jnp.max(jnp.abs(out - ref_f32)))

    # Also exercise a batch that forces a ragged last tile and >=2 grid steps.
    x2 = jax.random.normal(kx, (37, in_size), jnp.float32)
    out2 = jax.block_until_ready(jax.jit(lambda xx: candidate_forward(xx, params))(x2))
    ref2 = jnp.tanh(x2 @ w1.T + b1) @ w2.T + b2
    assert out2.shape == (37, out_size)
    assert jnp.allclose(out2, ref2, atol=1e-1, rtol=1e-1), \
        float(jnp.max(jnp.abs(out2 - ref2)))

    print("KERNEL_OK")
</pallas_src>

<mosaic_0001>
module attributes {stable_mosaic.version = 11 : i64} {
  func.func @mlp_kernel(%arg0: i32, %arg1: memref<8x12xf32, #tpu.memory_space<vmem>>, %arg2: memref<12x128xbf16, #tpu.memory_space<vmem>>, %arg3: memref<1x128xf32, #tpu.memory_space<vmem>>, %arg4: memref<128x8xbf16, #tpu.memory_space<vmem>>, %arg5: memref<1x8xf32, #tpu.memory_space<vmem>>, %arg6: memref<8x8xf32, #tpu.memory_space<vmem>>) attributes {dimension_semantics = [#tpu.dimension_semantics<parallel>], iteration_bounds = array<i64: 1>, scalar_prefetch = 0 : i64, scratch_operands = 0 : i64, tpu.core_type = #tpu.core_type<tc>, window_params = [{transform_indices = @transform_0, window_bounds = array<i64: 8, 12>}, {pipeline_mode = #tpu.pipeline_mode<synchronous>, transform_indices = @transform_1, window_bounds = array<i64: 12, 128>}, {pipeline_mode = #tpu.pipeline_mode<synchronous>, transform_indices = @transform_2, window_bounds = array<i64: 1, 128>}, {pipeline_mode = #tpu.pipeline_mode<synchronous>, transform_indices = @transform_3, window_bounds = array<i64: 128, 8>}, {pipeline_mode = #tpu.pipeline_mode<synchronous>, transform_indices = @transform_4, window_bounds = array<i64: 1, 8>}, {transform_indices = @transform_5, window_bounds = array<i64: 8, 8>}]} {
    %c0 = arith.constant 0 : index
    %c0_0 = arith.constant 0 : index
    %0 = vector.load %arg1[%c0, %c0_0] : memref<8x12xf32, #tpu.memory_space<vmem>>, vector<8x12xf32>
    %1 = arith.truncf %0 : vector<8x12xf32> to vector<8x12xbf16>
    %c0_1 = arith.constant 0 : index
    %c0_2 = arith.constant 0 : index
    %2 = vector.load %arg2[%c0_1, %c0_2] : memref<12x128xbf16, #tpu.memory_space<vmem>>, vector<12x128xbf16>
    %cst = arith.constant dense<0.000000e+00> : vector<8x128xf32>
    %3 = tpu.matmul %1, %2, %cst {dimension_numbers = #tpu.dot_dimension_numbers<[1], [0], [0], [1], [0, 0, 1, 1], [], []>} : vector<8x12xbf16>, vector<12x128xbf16>, vector<8x128xf32> -> vector<8x128xf32>
    %c0_3 = arith.constant 0 : index
    %c0_4 = arith.constant 0 : index
    %4 = vector.load %arg3[%c0_3, %c0_4] : memref<1x128xf32, #tpu.memory_space<vmem>>, vector<1x128xf32>
    %5 = vector.broadcast %4 : vector<1x128xf32> to vector<8x128xf32>
    %6 = arith.addf %3, %5 : vector<8x128xf32>
    %7 = math.tanh %6 : vector<8x128xf32>
    %8 = arith.truncf %7 : vector<8x128xf32> to vector<8x128xbf16>
    %c0_5 = arith.constant 0 : index
    %c0_6 = arith.constant 0 : index
    %9 = vector.load %arg4[%c0_5, %c0_6] : memref<128x8xbf16, #tpu.memory_space<vmem>>, vector<128x8xbf16>
    %cst_7 = arith.constant dense<0.000000e+00> : vector<8x8xf32>
    %10 = tpu.matmul %8, %9, %cst_7 {dimension_numbers = #tpu.dot_dimension_numbers<[1], [0], [0], [1], [0, 0, 1, 1], [], []>} : vector<8x128xbf16>, vector<128x8xbf16>, vector<8x8xf32> -> vector<8x8xf32>
    %c0_8 = arith.constant 0 : index
    %c0_9 = arith.constant 0 : index
    %11 = vector.load %arg5[%c0_8, %c0_9] : memref<1x8xf32, #tpu.memory_space<vmem>>, vector<1x8xf32>
    %12 = vector.broadcast %11 : vector<1x8xf32> to vector<8x8xf32>
    %13 = arith.addf %10, %12 : vector<8x8xf32>
    %c0_10 = arith.constant 0 : index
    %c0_11 = arith.constant 0 : index
    %14 = vector.load %arg6[%c0_10, %c0_11] : memref<8x8xf32, #tpu.memory_space<vmem>>, vector<8x8xf32>
    tpu.vector_store %arg6[%c0_10, %c0_11], %13 {strides = array<i32>} : memref<8x8xf32, #tpu.memory_space<vmem>>, vector<8x8xf32>,
    return
  }
  func.func @transform_0(%arg0: i32) -> (i32, i32) {
    %c0_i32 = arith.constant 0 : i32
    %c0_i32_0 = arith.constant 0 : i32
    return %arg0, %c0_i32 : i32, i32
  }
  func.func @transform_1(%arg0: i32) -> (i32, i32) {
    %c0_i32 = arith.constant 0 : i32
    %c0_i32_0 = arith.constant 0 : i32
    %c0_i32_1 = arith.constant 0 : i32
    return %c0_i32, %c0_i32_0 : i32, i32
  }
  func.func @transform_2(%arg0: i32) -> (i32, i32) {
    %c0_i32 = arith.constant 0 : i32
    %c0_i32_0 = arith.constant 0 : i32
    %c0_i32_1 = arith.constant 0 : i32
    return %c0_i32, %c0_i32_0 : i32, i32
  }
  func.func @transform_3(%arg0: i32) -> (i32, i32) {
    %c0_i32 = arith.constant 0 : i32
    %c0_i32_0 = arith.constant 0 : i32
    %c0_i32_1 = arith.constant 0 : i32
    return %c0_i32, %c0_i32_0 : i32, i32
  }
  func.func @transform_4(%arg0: i32) -> (i32, i32) {
    %c0_i32 = arith.constant 0 : i32
    %c0_i32_0 = arith.constant 0 : i32
    %c0_i32_1 = arith.constant 0 : i32
    return %c0_i32, %c0_i32_0 : i32, i32
  }
  func.func @transform_5(%arg0: i32) -> (i32, i32) {
    %c0_i32 = arith.constant 0 : i32
    %c0_i32_0 = arith.constant 0 : i32
    return %arg0, %c0_i32 : i32, i32
  }
}

</mosaic_0001>

<llo_original>
// kernel: _lambda_.1
$region0: #{_lambda_.1}
  #allocation0 [shape = 'u32[]', space=smem, size = 0x4, offset = 0x4, fixed_abs, tag = 'smem constant byte address 0x4 - core index']
  #allocation1 [shape = 'u32[72,128]{1,0:T(1,128)}', space=vmem, size = 0x9000, scoped, tag = 'internal scratch']
  %s0 = inlined_call_operand.hbm [shape: f32[4,12], index: 0, kind: input, shape index: {}]
  %s1 = inlined_call_operand.hbm [shape: bf16[12,128], index: 1, kind: input, shape index: {}]
  %s2 = inlined_call_operand.vmem [shape: f32[1,128], index: 2, kind: input, shape index: {}]
  %s3 = inlined_call_operand.hbm [shape: bf16[128,8], index: 3, kind: input, shape index: {}]
  %s4 = inlined_call_operand.vmem [shape: f32[1,8], index: 4, kind: input, shape index: {}]
  %s5 = inlined_call_operand.hbm [shape: f32[4,8], index: 5, kind: output, shape index: {}]
  %s6 = sld [smem:[#allocation0]]
  $region42: #{_lambda_.1} parent=0
    _
  %s8 = ssub.s32 1, %s6
  %s9 = scalar_select 0, %s8, %s6
  $region1: #{_lambda_.1} parent=0
    #allocation2 [shape = 'u8[4096]{0}', space=vmem, size = 0x1000, scoped, tag = 'input window, operand 0, single buffered']
    #allocation3 [shape = 's32[1]{0}', space=sflag, size = 0x4, scoped, tag = 'scoped memory for _lambda_.1']
    #allocation4 [shape = 's32[1]{0}', space=sflag, size = 0x4, scoped, tag = 'scoped memory for _lambda_.1']
    #allocation5 [shape = 'u8[4096]{0}', space=vmem, size = 0x1000, scoped, tag = 'input window, operand 1, single buffered']
    #allocation6 [shape = 's32[1]{0}', space=sflag, size = 0x4, scoped, tag = 'scoped memory for _lambda_.1']
    #allocation7 [shape = 'u8[32768]{0}', space=vmem, size = 0x8000, scoped, tag = 'input window, operand 3, single buffered']
    #allocation8 [shape = 'u8[4096]{0}', space=vmem, size = 0x1000, scoped, tag = 'output window, operand 0, single buffered']
    %10 = vsyncpa [#allocation3], 0
    %11 = vsyncpa [#allocation6], 0
    %12 = vsyncpa [#allocation4], 0
    // Predicated region
    $region2: #{_lambda_.1} parent=1 // pred_check
      _
    $region3: #{_lambda_.1} parent=1 // pred_check_branch
      %14 = sbr.rel (0) target = $region5
    $region4: #{_lambda_.1} parent=1 // pred_region
      %16 = vsyncadd [#allocation3], 64
      %s17 = sshll.u32 %s0, 4
      %s18 = int_to_ptr.hbm [resolvable:$true] %s17
      %s19 = sshll.u32 [#allocation2], 4
      %s20 = int_to_ptr.vmem [resolvable:$true] %s19
      %25 = dma.hbm_to_vmem [thread:$0]  %s18, 64, %s20, [#allocation3], 64, 64, 4
    $region5: #{_lambda_.1} parent=1 // pred_fallthru
      _
    // Predicated region
    $region6: #{_lambda_.1} parent=1 // pred_check
      _
    $region7: #{_lambda_.1} parent=1 // pred_check_branch
      %27 = sbr.rel (0) target = $region9
    $region8: #{_lambda_.1} parent=1 // pred_region
      %29 = vsyncadd [#allocation6], 0
      %s30 = sshll.u32 %s1, 4
      %s31 = int_to_ptr.hbm [resolvable:$true] %s30
      %s32 = sshll.u32 [#allocation5], 4
      %s33 = int_to_ptr.vmem [resolvable:$true] %s32
      %38 = dma.hbm_to_vmem [thread:$0]  %s31, 128, %s33, [#allocation6], 64, 64, 4
    $region9: #{_lambda_.1} parent=1 // pred_fallthru
      _
    // Predicated region
    $region10: #{_lambda_.1} parent=1 // pred_check
      _
    $region11: #{_lambda_.1} parent=1 // pred_check_branch
      %40 = sbr.rel (0) target = $region13
    $region12: #{_lambda_.1} parent=1 // pred_region
      _
    $region13: #{_lambda_.1} parent=1 // pred_fallthru
      _
    // Predicated region
    $region14: #{_lambda_.1} parent=1 // pred_check
      _
    $region15: #{_lambda_.1} parent=1 // pred_check_branch
      %42 = sbr.rel (0) target = $region17
    $region16: #{_lambda_.1} parent=1 // pred_region
      %44 = vsyncadd [#allocation6], 0
      %s45 = sshll.u32 %s3, 4
      %s46 = int_to_ptr.hbm [resolvable:$true] %s45
      %s47 = sshll.u32 [#allocation7], 4
      %s48 = int_to_ptr.vmem [resolvable:$true] %s47
      %53 = dma.hbm_to_vmem [thread:$0]  %s46, 1024, %s48, [#allocation6], 64, 64, 4
    $region17: #{_lambda_.1} parent=1 // pred_fallthru
      _
    // Predicated region
    $region18: #{_lambda_.1} parent=1 // pred_check
      _
    $region19: #{_lambda_.1} parent=1 // pred_check_branch
      %55 = sbr.rel (0) target = $region21
    $region20: #{_lambda_.1} parent=1 // pred_region
      _
    $region21: #{_lambda_.1} parent=1 // pred_fallthru
      _
    // Predicated region
    $region22: #{_lambda_.1} parent=1 // pred_check
      _
    $region23: #{_lambda_.1} parent=1 // pred_check_branch
      %57 = sbr.rel (0) target = $region25
    $region24: #{_lambda_.1} parent=1 // pred_region
      %59 = dma.done [#allocation3], 128
    $region25: #{_lambda_.1} parent=1 // pred_fallthru
      _
    // Predicated region
    $region26: #{_lambda_.1} parent=1 // pred_check
      _
    $region27: #{_lambda_.1} parent=1 // pred_check_branch
      %61 = sbr.rel (0) target = $region29
    $region28: #{_lambda_.1} parent=1 // pred_region
      %63 = dma.done [#allocation6], 128
    $region29: #{_lambda_.1} parent=1 // pred_fallthru
      _
    // Predicated region
    $region30: #{_lambda_.1} parent=1 // pred_check
      _
    $region31: #{_lambda_.1} parent=1 // pred_check_branch
      %65 = sbr.rel (0) target = $region33
    $region32: #{_lambda_.1} parent=1 // pred_region
      %67 = dma.done [#allocation6], 1024
    $region33: #{_lambda_.1} parent=1 // pred_fallthru
      _
    %v69 = vld [vmem:[#allocation2] sm:$0xff]
    %v70 = vpack.c.bf16 %v69, %v69
    %v71 = vld [vmem:[#allocation5] sm:$0xf]
    %v72 = vld [vmem:[#allocation5 + $0x4] sm:$0x3]
    %v73 = vld [vmem:[%s2] sm:$0x1]
    %v75 = vperm.slane %v73, 0
    %v79 = vunpack.c.l.b16 %v71
    %v80 = vunpack.c.l.b16 %v72
    %v81 = vpack.c.b16 %v80, %v79
    %vm82 = vcmask 97280
    %v84 = vsel %vm82, %v70, 0
    %vm86 = vcmask 1045504
    %v88 = vsel %vm86, %v81, 0
    %90 = vmatpush.bf16.msra.mxu0 0
    %91 = vmatpush.bf16.msra.mxu0 0
    %92 = vmatpush.bf16.msra.mxu0 0
    %93 = vmatpush.bf16.msra.mxu0 0
    %94 = vmatpush.bf16.msra.mxu0 0
    %95 = vmatpush.bf16.msra.mxu0 0
    %96 = vmatpush.bf16.msra.mxu0 0
    %97 = vmatpush.bf16.msra.mxu0 %v88
    %98 = vmatmul.bf16.gmra.mxu0 %v84
    %v99 = vpop.f32.mrf.mxu0
    %v100 = vadd.f32 %v75, %v99
    %v101 = vpop.f32.mrf.mxu0
    %102 = vdwg.mxu0
    %v103 = vtanh.pop %v100
    %v104 = vpack.c.bf16 %v103, %v103
    %v105 = vld [vmem:[#allocation7] sm:$0xf]
    %v106 = vld [vmem:[#allocation7 + $0x4] sm:$0xf]
    %v107 = vld [vmem:[#allocation7 + $0x8] sm:$0xf]
    %v108 = vld [vmem:[#allocation7 + $0xc] sm:$0xf]
    %v109 = vld [vmem:[#allocation7 + $0x10] sm:$0xf]
    %v110 = vld [vmem:[#allocation7 + $0x14] sm:$0xf]
    %v111 = vld [vmem:[#allocation7 + $0x18] sm:$0xf]
    %v112 = vld [vmem:[#allocation7 + $0x1c] sm:$0xf]
    %v113 = vld [vmem:[#allocation7 + $0x20] sm:$0xf]
    %v114 = vld [vmem:[#allocation7 + $0x24] sm:$0xf]
    %v115 = vld [vmem:[#allocation7 + $0x28] sm:$0xf]
    %v116 = vld [vmem:[#allocation7 + $0x2c] sm:$0xf]
    %v117 = vld [vmem:[#allocation7 + $0x30] sm:$0xf]
    %v118 = vld [vmem:[#allocation7 + $0x34] sm:$0xf]
    %v119 = vld [vmem:[#allocation7 + $0x38] sm:$0xf]
    %v120 = vld [vmem:[#allocation7 + $0x3c] sm:$0xf]
    %v121 = vld [vmem:[%s4] sm:$0x1]
    %v123 = vperm.slane %v121, 0
    %v141 = vunpack.c.l.b16 %v105
    %v142 = vunpack.c.l.b16 %v106
    %v143 = vunpack.c.l.b16 %v107
    %v144 = vunpack.c.l.b16 %v108
    %v145 = vunpack.c.l.b16 %v109
    %v146 = vunpack.c.l.b16 %v110
    %v147 = vunpack.c.l.b16 %v111
    %v148 = vunpack.c.l.b16 %v112
    %v149 = vunpack.c.l.b16 %v113
    %v150 = vunpack.c.l.b16 %v114
    %v151 = vunpack.c.l.b16 %v115
    %v152 = vunpack.c.l.b16 %v116
    %v153 = vunpack.c.l.b16 %v117
    %v154 = vunpack.c.l.b16 %v118
    %v155 = vunpack.c.l.b16 %v119
    %v156 = vunpack.c.l.b16 %v120
    %v157 = vpack.c.b16 %v142, %v141
    %v158 = vpack.c.b16 %v144, %v143
    %v159 = vpack.c.b16 %v146, %v145
    %v160 = vpack.c.b16 %v148, %v147
    %v161 = vpack.c.b16 %v150, %v149
    %v162 = vpack.c.b16 %v152, %v151
    %v163 = vpack.c.b16 %v154, %v153
    %v164 = vpack.c.b16 %v156, %v155
    %173 = vmatpush.bf16.msra.mxu0 %v164
    %174 = vmatpush.bf16.msra.mxu0 %v163
    %175 = vmatpush.bf16.msra.mxu0 %v162
    %176 = vmatpush.bf16.msra.mxu0 %v161
    %177 = vmatpush.bf16.msra.mxu0 %v160
    %178 = vmatpush.bf16.msra.mxu0 %v159
    %179 = vmatpush.bf16.msra.mxu0 %v158
    %180 = vmatpush.bf16.msra.mxu0 %v157
    %181 = vmatmul.bf16.gmra.mxu0 %v104
    %v182 = vpop.f32.mrf.mxu0
    %v183 = vadd.f32 %v123, %v182
    %v184 = vpop.f32.mrf.mxu0
    %185 = vdwg.mxu0
    %vm186 = vcmask 64512
    %187 = vst.msk [vmem:[#allocation8] sm:$0xff] %vm186, %v183
    // Predicated region
    $region34: #{_lambda_.1} parent=1 // pred_check
      _
    $region35: #{_lambda_.1} parent=1 // pred_check_branch
      %189 = sbr.rel (0) target = $region37
    $region36: #{_lambda_.1} parent=1 // pred_region
      %191 = vsyncadd [#allocation4], 64
      %s192 = sshll.u32 [#allocation8], 4
      %s193 = int_to_ptr.vmem [resolvable:$true] %s192
      %s194 = sshll.u32 %s5, 4
      %s195 = int_to_ptr.hbm [resolvable:$true] %s194
      %200 = dma.vmem_to_hbm [thread:$0]  %s193, 64, %s195, [#allocation4], 64, 64, 4
    $region37: #{_lambda_.1} parent=1 // pred_fallthru
      _
    // Predicated region
    $region38: #{_lambda_.1} parent=1 // pred_check
      _
    $region39: #{_lambda_.1} parent=1 // pred_check_branch
      %202 = sbr.rel (0) target = $region41
    $region40: #{_lambda_.1} parent=1 // pred_region
      %204 = dma.done [#allocation4], 128
    $region41: #{_lambda_.1} parent=1 // pred_fallthru
      _
    %205 = vsyncpa [#allocation3], 1
    %206 = vsyncpa [#allocation6], 1
    %207 = vsyncpa [#allocation4], 1

</llo_original>
